<compile_context>
chip_gen: v5e
topology: v5e:2x2
jax: 0.10.0
libtpu: 0.0.40
codegen_flags: <defaults>
</compile_context>

<pallas_src>
import functools
import math

import jax
import jax.numpy as jnp
from jax.experimental import pallas as pl
from jax.experimental.pallas import tpu as pltpu


def _round_up(a: int, b: int) -> int:
    return (a + b - 1) // b * b


def _graph_conv_kernel(adj_ref, s_ref, b_ref, o_ref, *, n_nodes, tk, mask_last_k):
    """One (row-tile i, contraction-tile k) step of out += adj_ik @ support_k."""
    k = pl.program_id(1)

    @pl.when(k == 0)
    def _():
        # Fold the bias into the accumulator init (output block is resident
        # across the whole k axis, dtype is already f32).
        o_ref[...] = jnp.broadcast_to(b_ref[...], o_ref.shape)

    a = adj_ref[...]
    if mask_last_k:
        # Ragged contraction edge: zero out-of-range columns of the adj tile
        # (out-of-bounds block contents are undefined).  Static no-op when the
        # contraction dim divides tk.
        col = k * tk + jax.lax.broadcasted_iota(jnp.int32, a.shape, 1)
        a = jnp.where(col < n_nodes, a, 0.0)

    # bf16 MXU operands, f32 accumulation directly into the output block.
    o_ref[...] += jnp.dot(
        a.astype(jnp.bfloat16), s_ref[...], preferred_element_type=jnp.float32)


def graph_conv(x, adj, weight, bias, *, tm=512, tk=1024):
    """GCN layer: adj @ (x @ weight) + bias (dense adj), Pallas TPU kernel.

    x:      (N, F_in)  float
    adj:    (N, N)     dense adjacency (any float dtype; streamed as-is)
    weight: (F_in, F_out)
    bias:   (F_out,)
    returns (N, F_out) float32
    """
    n, _ = x.shape
    f_out = weight.shape[1]

    # support = x @ W, computed once in f32 and rounded to bf16 exactly once.
    support = jnp.dot(x, weight, preferred_element_type=jnp.float32)
    support = support.astype(jnp.bfloat16)
    bias2d = bias.reshape(1, f_out).astype(jnp.float32)

    # --- tile clamping -----------------------------------------------------
    # Row tile: multiple of 16 (bf16 sublane packing); capped so the row grid
    # has >= 2 tiles whenever n allows it (v7x megacore).
    tm = max(16, min(tm, _round_up(n, 16)))
    if n >= 32:
        tm = min(tm, _round_up((n + 1) // 2, 16))
    if tm >= n:
        tm = n
    # Contraction tile: multiple of 128 (lane axis), or the full dim.
    tk = max(128, min(tk, _round_up(n, 128)))
    if tk >= n:
        tk = n

    grid_i = pl.cdiv(n, tm)
    grid_k = pl.cdiv(n, tk)
    n_rows = grid_i * tm
    n_cols = grid_k * tk
    mask_last_k = (n % tk) != 0

    # Pad only the (small) support matrix so padded contraction rows are
    # exact zeros; adj is never copied / cast / padded in the wrapper.
    if n_cols != n:
        support = jnp.pad(support, ((0, n_cols - n), (0, 0)))

    kernel = functools.partial(
        _graph_conv_kernel, n_nodes=n, tk=tk, mask_last_k=mask_last_k)

    flops = 2 * n_rows * n_cols * f_out
    bytes_accessed = (
        adj.size * adj.dtype.itemsize          # adj streamed once
        + support.size * 2 * grid_i            # support re-read per row tile
        + n_rows * f_out * 4 + f_out * 4)

    out = pl.pallas_call(
        kernel,
        out_shape=jax.ShapeDtypeStruct((n_rows, f_out), jnp.float32),
        grid_spec=pltpu.PrefetchScalarGridSpec(
            num_scalar_prefetch=0,
            grid=(grid_i, grid_k),
            in_specs=[
                pl.BlockSpec((tm, tk), lambda i, k: (i, k)),       # adj tile
                pl.BlockSpec((tk, f_out), lambda i, k: (k, 0)),    # support tile
                pl.BlockSpec((1, f_out), lambda i, k: (0, 0)),     # bias (resident)
            ],
            out_specs=pl.BlockSpec((tm, f_out), lambda i, k: (i, 0)),
        ),
        compiler_params=pltpu.CompilerParams(
            dimension_semantics=("parallel", "arbitrary"),
            vmem_limit_bytes=32 * 1024 * 1024,
        ),
        cost_estimate=pl.CostEstimate(
            flops=flops, transcendentals=0, bytes_accessed=bytes_accessed),
    )(adj, support, bias2d)

    return out[:n] if n_rows != n else out


def _xavier_uniform(key, fan_in, fan_out, dtype=jnp.float32):
    # Matches nn.init.xavier_uniform_ (gain=1.0).
    bound = math.sqrt(6.0 / (fan_in + fan_out))
    return jax.random.uniform(
        key, (fan_in, fan_out), dtype=dtype, minval=-bound, maxval=bound)


if __name__ == "__main__":
    key = jax.random.PRNGKey(0)
    k_w, k_x, k_adj = jax.random.split(key, 3)

    N, F_IN, F_OUT = 512, 64, 128

    weight = _xavier_uniform(k_w, F_IN, F_OUT)
    bias = jnp.zeros((F_OUT,), dtype=jnp.float32)

    x = jax.random.normal(k_x, (N, F_IN), dtype=jnp.float32)
    # Dense normalized adjacency-like matrix.
    adj_raw = (jax.random.uniform(k_adj, (N, N)) < 0.1).astype(jnp.float32)
    adj = adj_raw + jnp.eye(N, dtype=jnp.float32)
    adj = adj / jnp.sum(adj, axis=1, keepdims=True)

    # Small tiles: exercises multi-step k accumulation into the resident block.
    out = graph_conv(x, adj, weight, bias, tm=128, tk=128)
    out = jax.block_until_ready(out)
    assert out.shape == (N, F_OUT)

    # Reference with matching bf16 operand rounding and f32 accumulation.
    support_bf = jnp.dot(x, weight, preferred_element_type=jnp.float32).astype(jnp.bfloat16)
    ref_bf16 = jnp.dot(adj.astype(jnp.bfloat16), support_bf,
                       preferred_element_type=jnp.float32) + bias
    assert jnp.allclose(out, ref_bf16, atol=2e-3, rtol=2e-3)

    # Pure-f32 PyTorch-equivalent reference.
    ref_f32 = adj @ (x @ weight) + bias
    assert jnp.allclose(out, ref_f32, atol=5e-2, rtol=5e-2)

    # Default (large) tiles, row axis split across >= 2 tiles.
    out_big = jax.block_until_ready(graph_conv(x, adj, weight, bias))
    assert jnp.allclose(out_big, ref_f32, atol=5e-2, rtol=5e-2)

    # Ragged N: exercises the in-kernel last-k-tile mask and row slicing.
    N2 = 200
    out2 = jax.block_until_ready(
        graph_conv(x[:N2], adj[:N2, :N2], weight, bias, tm=64, tk=128))
    ref2 = adj[:N2, :N2] @ (x[:N2] @ weight) + bias
    assert out2.shape == (N2, F_OUT)
    assert jnp.allclose(out2, ref2, atol=5e-2, rtol=5e-2)

    print("KERNEL_OK")
</pallas_src>

<mosaic_0001>
module attributes {stable_mosaic.version = 11 : i64} {
  func.func @_graph_conv_kernel(%arg0: i32, %arg1: i32, %arg2: memref<128x128xf32, #tpu.memory_space<vmem>>, %arg3: memref<128x128xbf16, #tpu.memory_space<vmem>>, %arg4: memref<1x128xf32, #tpu.memory_space<vmem>>, %arg5: memref<128x128xf32, #tpu.memory_space<vmem>>) attributes {dimension_semantics = [#tpu.dimension_semantics<parallel>, #tpu.dimension_semantics<arbitrary>], iteration_bounds = array<i64: 4, 4>, scalar_prefetch = 0 : i64, scratch_operands = 0 : i64, tpu.core_type = #tpu.core_type<tc>, window_params = [{transform_indices = @transform_0, window_bounds = array<i64: 128, 128>}, {transform_indices = @transform_1, window_bounds = array<i64: 128, 128>}, {pipeline_mode = #tpu.pipeline_mode<synchronous>, transform_indices = @transform_2, window_bounds = array<i64: 1, 128>}, {transform_indices = @transform_3, window_bounds = array<i64: 128, 128>}]} {
    %c0_i32 = arith.constant 0 : i32
    %0 = arith.cmpi eq, %arg1, %c0_i32 : i32
    %1 = arith.extui %0 : i1 to i32
    %c0_i32_0 = arith.constant 0 : i32
    %2 = arith.cmpi ne, %1, %c0_i32_0 : i32
    scf.if %2 {
      %c0_8 = arith.constant 0 : index
      %c0_9 = arith.constant 0 : index
      %10 = vector.load %arg4[%c0_8, %c0_9] : memref<1x128xf32, #tpu.memory_space<vmem>>, vector<1x128xf32>
      %11 = vector.shape_cast %10 : vector<1x128xf32> to vector<1x128xf32>
      %12 = vector.broadcast %11 : vector<1x128xf32> to vector<128x128xf32>
      %c0_10 = arith.constant 0 : index
      %c0_11 = arith.constant 0 : index
      %13 = vector.load %arg5[%c0_10, %c0_11] : memref<128x128xf32, #tpu.memory_space<vmem>>, vector<128x128xf32>
      tpu.vector_store %arg5[%c0_10, %c0_11], %12 {strides = array<i32>} : memref<128x128xf32, #tpu.memory_space<vmem>>, vector<128x128xf32>,
    } else {
    }
    %c0 = arith.constant 0 : index
    %c0_1 = arith.constant 0 : index
    %3 = vector.load %arg2[%c0, %c0_1] : memref<128x128xf32, #tpu.memory_space<vmem>>, vector<128x128xf32>
    %c0_2 = arith.constant 0 : index
    %c0_3 = arith.constant 0 : index
    %4 = vector.load %arg5[%c0_2, %c0_3] : memref<128x128xf32, #tpu.memory_space<vmem>>, vector<128x128xf32>
    %5 = arith.truncf %3 : vector<128x128xf32> to vector<128x128xbf16>
    %c0_4 = arith.constant 0 : index
    %c0_5 = arith.constant 0 : index
    %6 = vector.load %arg3[%c0_4, %c0_5] : memref<128x128xbf16, #tpu.memory_space<vmem>>, vector<128x128xbf16>
    %cst = arith.constant dense<0.000000e+00> : vector<128x128xf32>
    %7 = tpu.matmul %5, %6, %cst {dimension_numbers = #tpu.dot_dimension_numbers<[1], [0], [0], [1], [0, 0, 1, 1], [], []>} : vector<128x128xbf16>, vector<128x128xbf16>, vector<128x128xf32> -> vector<128x128xf32>
    %8 = arith.addf %4, %7 : vector<128x128xf32>
    %c0_6 = arith.constant 0 : index
    %c0_7 = arith.constant 0 : index
    %9 = vector.load %arg5[%c0_6, %c0_7] : memref<128x128xf32, #tpu.memory_space<vmem>>, vector<128x128xf32>
    tpu.vector_store %arg5[%c0_6, %c0_7], %8 {strides = array<i32>} : memref<128x128xf32, #tpu.memory_space<vmem>>, vector<128x128xf32>,
    return
  }
  func.func @transform_0(%arg0: i32, %arg1: i32) -> (i32, i32) {
    %c0_i32 = arith.constant 0 : i32
    return %arg0, %arg1 : i32, i32
  }
  func.func @transform_1(%arg0: i32, %arg1: i32) -> (i32, i32) {
    %c0_i32 = arith.constant 0 : i32
    %c0_i32_0 = arith.constant 0 : i32
    return %arg1, %c0_i32 : i32, i32
  }
  func.func @transform_2(%arg0: i32, %arg1: i32) -> (i32, i32) {
    %c0_i32 = arith.constant 0 : i32
    %c0_i32_0 = arith.constant 0 : i32
    %c0_i32_1 = arith.constant 0 : i32
    return %c0_i32, %c0_i32_0 : i32, i32
  }
  func.func @transform_3(%arg0: i32, %arg1: i32) -> (i32, i32) {
    %c0_i32 = arith.constant 0 : i32
    %c0_i32_0 = arith.constant 0 : i32
    return %arg0, %c0_i32 : i32, i32
  }
}

</mosaic_0001>

<llo_original>
// kernel: tpu_custom_call.1
$region0: #{tpu_custom_call.1}
  #allocation0 [shape = 'u32[]', space=smem, size = 0x4, offset = 0x4, fixed_abs, tag = 'smem constant byte address 0x4 - core index']
  #allocation1 [shape = 'u32[72,128]{1,0:T(1,128)}', space=vmem, size = 0x9000, scoped, tag = 'internal scratch']
  %s0 = inlined_call_operand.hbm [shape: f32[512,512], index: 0, kind: input, shape index: {}]
  %s1 = inlined_call_operand.hbm [shape: bf16[512,128], index: 1, kind: input, shape index: {}]
  %s2 = inlined_call_operand.vmem [shape: f32[1,128], index: 2, kind: input, shape index: {}]
  %s3 = inlined_call_operand.hbm [shape: f32[512,128], index: 3, kind: output, shape index: {}]
  %s4 = sld [smem:[#allocation0]]
  $region57: #{tpu_custom_call.1} parent=0
    _
  %s6 = ssub.s32 1, %s4
  %s7 = scalar_select 0, %s6, %s4
  $region1: #{tpu_custom_call.1} parent=0
    #allocation2 [shape = 'u8[131072]{0}', space=vmem, size = 0x20000, scoped, tag = 'input window, operand 0']
    #allocation3 [shape = 's32[2]{0}', space=sflag, size = 0x8, scoped, tag = 'scoped memory for tpu_custom_call.1']
    #allocation4 [shape = 's32[2]{0}', space=sflag, size = 0x8, scoped, tag = 'scoped memory for tpu_custom_call.1']
    #allocation5 [shape = 'u8[65536]{0}', space=vmem, size = 0x10000, scoped, tag = 'input window, operand 1']
    #allocation6 [shape = 's32[2]{0}', space=sflag, size = 0x8, scoped, tag = 'scoped memory for tpu_custom_call.1']
    #allocation7 [shape = 'u8[131072]{0}', space=vmem, size = 0x20000, scoped, tag = 'output window, operand 0']
    %8 = vsyncpa [#allocation3], 0
    %s9 = scalar_lea.sflag [#allocation3], 1
    %10 = vsyncpa %s9, 0
    %11 = vsyncpa [#allocation6], 0
    %s12 = scalar_lea.sflag [#allocation6], 1
    %13 = vsyncpa %s12, 0
    %14 = vsyncpa [#allocation4], 0
    %s15 = scalar_lea.sflag [#allocation4], 1
    %16 = vsyncpa %s15, 0
    loop: start=0, step=1, limit=18
    $region2: #{tpu_custom_call.1} parent=1 // loop_pre_header
      _
    $region3: #{tpu_custom_call.1} parent=1 // loop_header
      %s18 = sphi 0, %s22
      %p19 = scmp.ge.s32.totalorder %s18, 18
      %s25 = sphi 0, %s37
      %s26 = sphi 0, %s33
      %s27 = sphi 0, %s25
      %s28 = sphi 0, %s26
      %s29 = sphi 0, %s27
      %s30 = sphi 0, %s28
      %s42 = sphi 0, %s44
      %s45 = sphi 0, %s42
      %s46 = sphi 0, %s45
      %s62 = sphi 0, %s46
      %s68 = sphi 0, %s70
      %s71 = sphi 0, %s68
      %s72 = sphi 0, %s71
      %s88 = sphi 0, %s72
      %s92 = sphi 0, %s92
      %s94 = sphi 0, %s92
      %s95 = sphi 0, %s94
      %s109 = sphi 0, %s95
      %s115 = sphi 0, %s117
      %s118 = sphi 0, %s115
      %s119 = sphi 0, %s118
      %s135 = sphi 0, %s119
    $region4: #{tpu_custom_call.1} parent=1 // loop_header_branch
      %21 = sbr.rel (%p19) target = $region8
    $region5: #{tpu_custom_call.1} parent=1 // loop_body
      %s23 = ssub.s32 %s18, 1
      %s24 = ssub.s32 %s18, 2
      %s31 = sadd.s32 1, %s26
      %p32 = scmp.ge.s32.totalorder %s31, 4
      %s33 = scalar_select %p32, 0, %s31
      %s34 = sadd.s32 1, %s25
      %s35 = scalar_select %p32, %s34, %s25
      %p36 = scmp.ge.s32.totalorder %s35, 4
      %s37 = scalar_select %p36, 0, %s35
      %s38 = ssub.s32 %s25, %s37
      %s39 = ssub.s32 %s26, %s33
      %s40 = sor.u32 %s38, %s39
      %p41 = scmp.eq.s32.totalorder %s40, 0
      %s43 = sadd.s32 %s42, 1
      %s44 = scalar_select %p41, %s42, %s43
      %p47 = pneg %p41
      %p48 = scmp.eq.s32.totalorder %s18, 15
      %p49 = por %p47, %p48
      %p50 = scmp.ne.s32.totalorder %s42, %s45
      %p51 = scmp.eq.s32.totalorder %s18, 0
      %p52 = por %p50, %p51
      %p53 = scmp.ne.s32.totalorder %s42, %s45
      %p54 = scmp.eq.s32.totalorder %s23, 15
      %p55 = por %p53, %p54
      %p56 = scmp.ne.s32.totalorder %s45, %s46
      %p57 = scmp.eq.s32.totalorder %s23, 0
      %p58 = por %p56, %p57
      %p59 = scmp.ne.s32.totalorder %s45, %s46
      %p60 = scmp.eq.s32.totalorder %s24, 15
      %p61 = por %p59, %p60
      %p63 = scmp.ne.s32.totalorder %s46, %s62
      %p64 = scmp.eq.s32.totalorder %s24, 0
      %p65 = por %p63, %p64
      %s66 = ssub.s32 %s26, %s33
      %p67 = scmp.eq.s32.totalorder %s66, 0
      %s69 = sadd.s32 %s68, 1
      %s70 = scalar_select %p67, %s68, %s69
      %p73 = pneg %p67
      %p74 = scmp.eq.s32.totalorder %s18, 15
      %p75 = por %p73, %p74
      %p76 = scmp.ne.s32.totalorder %s68, %s71
      %p77 = scmp.eq.s32.totalorder %s18, 0
      %p78 = por %p76, %p77
      %p79 = scmp.ne.s32.totalorder %s68, %s71
      %p80 = scmp.eq.s32.totalorder %s23, 15
      %p81 = por %p79, %p80
      %p82 = scmp.ne.s32.totalorder %s71, %s72
      %p83 = scmp.eq.s32.totalorder %s23, 0
      %p84 = por %p82, %p83
      %p85 = scmp.ne.s32.totalorder %s71, %s72
      %p86 = scmp.eq.s32.totalorder %s24, 15
      %p87 = por %p85, %p86
      %p89 = scmp.ne.s32.totalorder %s72, %s88
      %p90 = scmp.eq.s32.totalorder %s24, 0
      %p91 = por %p89, %p90
      %s93 = sadd.s32 %s92, 1
      %p96 = scmp.eq.s32.totalorder %s18, 15
      %p97 = scmp.ne.s32.totalorder %s92, %s94
      %p98 = scmp.eq.s32.totalorder %s18, 0
      %p99 = por %p97, %p98
      %p100 = scmp.ne.s32.totalorder %s92, %s94
      %p101 = scmp.eq.s32.totalorder %s23, 15
      %p102 = por %p100, %p101
      %p103 = scmp.ne.s32.totalorder %s94, %s95
      %p104 = scmp.eq.s32.totalorder %s23, 0
      %p105 = por %p103, %p104
      %p106 = scmp.ne.s32.totalorder %s94, %s95
      %p107 = scmp.eq.s32.totalorder %s24, 15
      %p108 = por %p106, %p107
      %p110 = scmp.ne.s32.totalorder %s95, %s109
      %p111 = scmp.eq.s32.totalorder %s24, 0
      %p112 = por %p110, %p111
      %s113 = ssub.s32 %s25, %s37
      %p114 = scmp.eq.s32.totalorder %s113, 0
      %s116 = sadd.s32 %s115, 1
      %s117 = scalar_select %p114, %s115, %s116
      %p120 = pneg %p114
      %p121 = scmp.eq.s32.totalorder %s18, 15
      %p122 = por %p120, %p121
      %p123 = scmp.ne.s32.totalorder %s115, %s118
      %p124 = scmp.eq.s32.totalorder %s18, 0
      %p125 = por %p123, %p124
      %p126 = scmp.ne.s32.totalorder %s115, %s118
      %p127 = scmp.eq.s32.totalorder %s23, 15
      %p128 = por %p126, %p127
      %p129 = scmp.ne.s32.totalorder %s118, %s119
      %p130 = scmp.eq.s32.totalorder %s23, 0
      %p131 = por %p129, %p130
      %p132 = scmp.ne.s32.totalorder %s118, %s119
      %p133 = scmp.eq.s32.totalorder %s24, 15
      %p134 = por %p132, %p133
      %p136 = scmp.ne.s32.totalorder %s119, %s135
      %p137 = scmp.eq.s32.totalorder %s24, 0
      %p138 = por %p136, %p137
      %p139 = scmp.le.s32.totalorder 1, %s18
      %p140 = scmp.lt.s32.totalorder %s18, 17
      %p141 = pnand %p139, %p140
      %p142 = pneg %p141
      // Predicated region
      $region9: #{tpu_custom_call.1} parent=5 // pred_check
        _
      $region10: #{tpu_custom_call.1} parent=5 // pred_check_branch
        %144 = sbr.rel (%p141) target = $region12
      $region11: #{tpu_custom_call.1} parent=5 // pred_region
        %s145 = ssub.s32 %s18, 1
        // Predicated region
        $region13: #{tpu_custom_call.1} parent=11 // pred_check
          %p146 = pneg %p105
        $region14: #{tpu_custom_call.1} parent=11 // pred_check_branch
          %148 = sbr.rel (%p146) target = $region16
        $region15: #{tpu_custom_call.1} parent=11 // pred_region
          _
        $region16: #{tpu_custom_call.1} parent=11 // pred_fallthru
          _
      $region12: #{tpu_custom_call.1} parent=5 // pred_fallthru
        _
      %p149 = scmp.lt.s32.totalorder %s18, 16
      // Predicated region
      $region17: #{tpu_custom_call.1} parent=5 // pred_check
        %p150 = pneg %p149
      $region18: #{tpu_custom_call.1} parent=5 // pred_check_branch
        %152 = sbr.rel (%p150) target = $region20
      $region19: #{tpu_custom_call.1} parent=5 // pred_region
        // Predicated region
        $region21: #{tpu_custom_call.1} parent=19 // pred_check
          %p153 = pneg %p52
        $region22: #{tpu_custom_call.1} parent=19 // pred_check_branch
          %155 = sbr.rel (%p153) target = $region24
        $region23: #{tpu_custom_call.1} parent=19 // pred_region
          %s156 = sand.u32 %s42, 1
          %s157 = scalar_lea.sflag [#allocation3], %s156
          %s158 = sand.u32 %s42, 1
          %s159 = smul.addr %s158, 128
          %s160 = scalar_lea.vmem [#allocation2], %s159
          %s161 = smul.u32 16, %s25
          %163 = vsyncadd %s157, 0
          %s164 = smul.addr %s161, 4
          %s165 = sadd.s32 %s26, %s164
          %s166 = smul.addr %s165, 8
          %s167 = scalar_lea.hbm %s0, %s166
          %s168 = sshll.u32 %s167, 4
          %s169 = int_to_ptr.hbm [resolvable:$true] %s168
          %s170 = sshll.u32 %s160, 4
          %s171 = int_to_ptr.vmem [resolvable:$true] %s170
          %176 = dma.hbm_to_vmem [thread:$0]  %s169, 2048, %s171, %s157, 512, 128, 8
        $region24: #{tpu_custom_call.1} parent=19 // pred_fallthru
          _
        // Predicated region
        $region25: #{tpu_custom_call.1} parent=19 // pred_check
          %p177 = pneg %p78
        $region26: #{tpu_custom_call.1} parent=19 // pred_check_branch
          %179 = sbr.rel (%p177) target = $region28
        $region27: #{tpu_custom_call.1} parent=19 // pred_region
          %s180 = sand.u32 %s68, 1
          %s181 = scalar_lea.sflag [#allocation6], %s180
          %s182 = sand.u32 %s68, 1
          %s183 = smul.addr %s182, 64
          %s184 = scalar_lea.vmem [#allocation5], %s183
          %s185 = smul.u32 16, %s26
          %187 = vsyncadd %s181, 0
          %s188 = smul.addr %s185, 4
          %s189 = scalar_lea.hbm %s1, %s188
          %s190 = sshll.u32 %s189, 4
          %s191 = int_to_ptr.hbm [resolvable:$true] %s190
          %s192 = sshll.u32 %s184, 4
          %s193 = int_to_ptr.vmem [resolvable:$true] %s192
          %198 = dma.hbm_to_vmem [thread:$0]  %s191, 1024, %s193, %s181, 64, 64, 4
        $region28: #{tpu_custom_call.1} parent=19 // pred_fallthru
          _
      $region20: #{tpu_custom_call.1} parent=5 // pred_fallthru
        _
      %p199 = scmp.le.s32.totalorder 1, %s18
      %p200 = scmp.lt.s32.totalorder %s18, 17
      %p201 = pnand %p199, %p200
      %p202 = pneg %p201
      // Predicated region
      $region29: #{tpu_custom_call.1} parent=5 // pred_check
        _
      $region30: #{tpu_custom_call.1} parent=5 // pred_check_branch
        %204 = sbr.rel (%p201) target = $region32
      $region31: #{tpu_custom_call.1} parent=5 // pred_region
        %s205 = ssub.s32 %s18, 1
        %s206 = sand.u32 %s45, 1
        %s207 = scalar_lea.sflag [#allocation3], %s206
        %s208 = sand.u32 %s45, 1
        %s209 = smul.addr %s208, 128
        %s210 = scalar_lea.vmem [#allocation2], %s209
        // Predicated region
        $region33: #{tpu_custom_call.1} parent=31 // pred_check
          %p211 = pneg %p58
        $region34: #{tpu_custom_call.1} parent=31 // pred_check_branch
          %213 = sbr.rel (%p211) target = $region36
        $region35: #{tpu_custom_call.1} parent=31 // pred_region
          %215 = dma.done %s207, 2048
        $region36: #{tpu_custom_call.1} parent=31 // pred_fallthru
          _
        %s216 = sand.u32 %s71, 1
        %s217 = scalar_lea.sflag [#allocation6], %s216
        %s218 = sand.u32 %s71, 1
        %s219 = smul.addr %s218, 64
        %s220 = scalar_lea.vmem [#allocation5], %s219
        // Predicated region
        $region37: #{tpu_custom_call.1} parent=31 // pred_check
          %p221 = pneg %p84
        $region38: #{tpu_custom_call.1} parent=31 // pred_check_branch
          %223 = sbr.rel (%p221) target = $region40
        $region39: #{tpu_custom_call.1} parent=31 // pred_region
          %225 = dma.done %s217, 1024
        $region40: #{tpu_custom_call.1} parent=31 // pred_fallthru
          _
        %s226 = sand.u32 %s45, 1
        %s227 = scalar_lea.sflag [#allocation3], %s226
        %s228 = sand.u32 %s45, 1
        %s229 = smul.addr %s228, 128
        %s230 = scalar_lea.vmem [#allocation2], %s229
        %p231 = pneg %p58
        %p232 = pneg %p55
        %s233 = sand.u32 %s71, 1
        %s234 = scalar_lea.sflag [#allocation6], %s233
        %s235 = sand.u32 %s71, 1
        %s236 = smul.addr %s235, 64
        %s237 = scalar_lea.vmem [#allocation5], %s236
        %p238 = pneg %p84
        %p239 = pneg %p81
        %p240 = pneg %p105
        %p241 = pneg %p102
        %p242 = pneg %p131
        %p243 = pneg %p128
        %s244 = sand.u32 %s118, 1
        %s245 = scalar_lea.sflag [#allocation4], %s244
        %s246 = sand.u32 %s118, 1
        %s247 = smul.addr %s246, 128
        %s248 = scalar_lea.vmem [#allocation7], %s247
        %s249 = smul.u32 16, %s27
        %s250 = smul.u32 16, %s28
        %s251 = smul.u32 16, %s27
        %p252 = scmp.eq.s32.totalorder %s28, 0
        // Predicated region
        $region41: #{tpu_custom_call.1} parent=31 // pred_check
          %p253 = pneg %p252
        $region42: #{tpu_custom_call.1} parent=31 // pred_check_branch
          %255 = sbr.rel (%p253) target = $region44
        $region43: #{tpu_custom_call.1} parent=31 // pred_region
          %v256 = vld [vmem:[%s2] sm:$0x1]
          %v258 = vperm.slane %v256, 0
          %260 = vst [vmem:[%s248] sm:$0xff] %v258
          %261 = vst [vmem:[%s248 + $0x8] sm:$0xff] %v258
          %262 = vst [vmem:[%s248 + $0x10] sm:$0xff] %v258
          %263 = vst [vmem:[%s248 + $0x18] sm:$0xff] %v258
          %264 = vst [vmem:[%s248 + $0x20] sm:$0xff] %v258
          %265 = vst [vmem:[%s248 + $0x28] sm:$0xff] %v258
          %266 = vst [vmem:[%s248 + $0x30] sm:$0xff] %v258
          %267 = vst [vmem:[%s248 + $0x38] sm:$0xff] %v258
          %268 = vst [vmem:[%s248 + $0x40] sm:$0xff] %v258
          %269 = vst [vmem:[%s248 + $0x48] sm:$0xff] %v258
          %270 = vst [vmem:[%s248 + $0x50] sm:$0xff] %v258
          %271 = vst [vmem:[%s248 + $0x58] sm:$0xff] %v258
          %272 = vst [vmem:[%s248 + $0x60] sm:$0xff] %v258
          %273 = vst [vmem:[%s248 + $0x68] sm:$0xff] %v258
          %274 = vst [vmem:[%s248 + $0x70] sm:$0xff] %v258
          %275 = vst [vmem:[%s248 + $0x78] sm:$0xff] %v258
        $region44: #{tpu_custom_call.1} parent=31 // pred_fallthru
          _
        %v276 = vld [vmem:[%s210] sm:$0xff]
        %v277 = vld [vmem:[%s210 + $0x8] sm:$0xff]
        %v278 = vld [vmem:[%s210 + $0x10] sm:$0xff]
        %v279 = vld [vmem:[%s210 + $0x18] sm:$0xff]
        %v280 = vld [vmem:[%s210 + $0x20] sm:$0xff]
        %v281 = vld [vmem:[%s210 + $0x28] sm:$0xff]
        %v282 = vld [vmem:[%s210 + $0x30] sm:$0xff]
        %v283 = vld [vmem:[%s210 + $0x38] sm:$0xff]
        %v284 = vld [vmem:[%s210 + $0x40] sm:$0xff]
        %v285 = vld [vmem:[%s210 + $0x48] sm:$0xff]
        %v286 = vld [vmem:[%s210 + $0x50] sm:$0xff]
        %v287 = vld [vmem:[%s210 + $0x58] sm:$0xff]
        %v288 = vld [vmem:[%s210 + $0x60] sm:$0xff]
        %v289 = vld [vmem:[%s210 + $0x68] sm:$0xff]
        %v290 = vld [vmem:[%s210 + $0x70] sm:$0xff]
        %v291 = vld [vmem:[%s210 + $0x78] sm:$0xff]
        %v292 = vld [vmem:[%s248] sm:$0xff]
        %v293 = vld [vmem:[%s248 + $0x8] sm:$0xff]
        %v294 = vld [vmem:[%s248 + $0x10] sm:$0xff]
        %v295 = vld [vmem:[%s248 + $0x18] sm:$0xff]
        %v296 = vld [vmem:[%s248 + $0x20] sm:$0xff]
        %v297 = vld [vmem:[%s248 + $0x28] sm:$0xff]
        %v298 = vld [vmem:[%s248 + $0x30] sm:$0xff]
        %v299 = vld [vmem:[%s248 + $0x38] sm:$0xff]
        %v300 = vld [vmem:[%s248 + $0x40] sm:$0xff]
        %v301 = vld [vmem:[%s248 + $0x48] sm:$0xff]
        %v302 = vld [vmem:[%s248 + $0x50] sm:$0xff]
        %v303 = vld [vmem:[%s248 + $0x58] sm:$0xff]
        %v304 = vld [vmem:[%s248 + $0x60] sm:$0xff]
        %v305 = vld [vmem:[%s248 + $0x68] sm:$0xff]
        %v306 = vld [vmem:[%s248 + $0x70] sm:$0xff]
        %v307 = vld [vmem:[%s248 + $0x78] sm:$0xff]
        %v308 = vpack.c.bf16 %v277, %v276
        %v309 = vpack.c.bf16 %v279, %v278
        %v310 = vpack.c.bf16 %v281, %v280
        %v311 = vpack.c.bf16 %v283, %v282
        %v312 = vpack.c.bf16 %v285, %v284
        %v313 = vpack.c.bf16 %v287, %v286
        %v314 = vpack.c.bf16 %v289, %v288
        %v315 = vpack.c.bf16 %v291, %v290
        %v316 = vld [vmem:[%s220] sm:$0xf]
        %v317 = vld [vmem:[%s220 + $0x4] sm:$0xf]
        %v318 = vld [vmem:[%s220 + $0x8] sm:$0xf]
        %v319 = vld [vmem:[%s220 + $0xc] sm:$0xf]
        %v320 = vld [vmem:[%s220 + $0x10] sm:$0xf]
        %v321 = vld [vmem:[%s220 + $0x14] sm:$0xf]
        %v322 = vld [vmem:[%s220 + $0x18] sm:$0xf]
        %v323 = vld [vmem:[%s220 + $0x1c] sm:$0xf]
        %v324 = vld [vmem:[%s220 + $0x20] sm:$0xf]
        %v325 = vld [vmem:[%s220 + $0x24] sm:$0xf]
        %v326 = vld [vmem:[%s220 + $0x28] sm:$0xf]
        %v327 = vld [vmem:[%s220 + $0x2c] sm:$0xf]
        %v328 = vld [vmem:[%s220 + $0x30] sm:$0xf]
        %v329 = vld [vmem:[%s220 + $0x34] sm:$0xf]
        %v330 = vld [vmem:[%s220 + $0x38] sm:$0xf]
        %v331 = vld [vmem:[%s220 + $0x3c] sm:$0xf]
        %v348 = vunpack.c.l.b16 %v316
        %v349 = vunpack.c.l.b16 %v317
        %v350 = vunpack.c.l.b16 %v318
        %v351 = vunpack.c.l.b16 %v319
        %v352 = vunpack.c.l.b16 %v320
        %v353 = vunpack.c.l.b16 %v321
        %v354 = vunpack.c.l.b16 %v322
        %v355 = vunpack.c.l.b16 %v323
        %v356 = vunpack.c.l.b16 %v324
        %v357 = vunpack.c.l.b16 %v325
        %v358 = vunpack.c.l.b16 %v326
        %v359 = vunpack.c.l.b16 %v327
        %v360 = vunpack.c.l.b16 %v328
        %v361 = vunpack.c.l.b16 %v329
        %v362 = vunpack.c.l.b16 %v330
        %v363 = vunpack.c.l.b16 %v331
        %v364 = vpack.c.b16 %v349, %v348
        %v365 = vpack.c.b16 %v351, %v350
        %v366 = vpack.c.b16 %v353, %v352
        %v367 = vpack.c.b16 %v355, %v354
        %v368 = vpack.c.b16 %v357, %v356
        %v369 = vpack.c.b16 %v359, %v358
        %v370 = vpack.c.b16 %v361, %v360
        %v371 = vpack.c.b16 %v363, %v362
        %380 = vmatpush.bf16.msra.mxu0 %v371
        %381 = vmatpush.bf16.msra.mxu0 %v370
        %382 = vmatpush.bf16.msra.mxu0 %v369
        %383 = vmatpush.bf16.msra.mxu0 %v368
        %384 = vmatpush.bf16.msra.mxu0 %v367
        %385 = vmatpush.bf16.msra.mxu0 %v366
        %386 = vmatpush.bf16.msra.mxu0 %v365
        %387 = vmatpush.bf16.msra.mxu0 %v364
        %388 = vmatmul.bf16.gmra.mxu0 %v308
        %v389 = vpop.f32.mrf.mxu0
        %v390 = vadd.f32 0.0, %v389
        %v391 = vpop.f32.mrf.mxu0
        %v392 = vadd.f32 0.0, %v391
        %393 = vmatmul.bf16.gmra.mxu0 %v309
        %v394 = vpop.f32.mrf.mxu0
        %v395 = vadd.f32 0.0, %v394
        %v396 = vpop.f32.mrf.mxu0
        %v397 = vadd.f32 0.0, %v396
        %398 = vmatmul.bf16.gmra.mxu0 %v310
        %v399 = vpop.f32.mrf.mxu0
        %v400 = vadd.f32 0.0, %v399
        %v401 = vpop.f32.mrf.mxu0
        %v402 = vadd.f32 0.0, %v401
        %403 = vmatmul.bf16.gmra.mxu0 %v311
        %v404 = vpop.f32.mrf.mxu0
        %v405 = vadd.f32 0.0, %v404
        %v406 = vpop.f32.mrf.mxu0
        %v407 = vadd.f32 0.0, %v406
        %408 = vmatmul.bf16.gmra.mxu0 %v312
        %v409 = vpop.f32.mrf.mxu0
        %v410 = vadd.f32 0.0, %v409
        %v411 = vpop.f32.mrf.mxu0
        %v412 = vadd.f32 0.0, %v411
        %413 = vmatmul.bf16.gmra.mxu0 %v313
        %v414 = vpop.f32.mrf.mxu0
        %v415 = vadd.f32 0.0, %v414
        %v416 = vpop.f32.mrf.mxu0
        %v417 = vadd.f32 0.0, %v416
        %418 = vmatmul.bf16.gmra.mxu0 %v314
        %v419 = vpop.f32.mrf.mxu0
        %v420 = vadd.f32 0.0, %v419
        %v421 = vpop.f32.mrf.mxu0
        %v422 = vadd.f32 0.0, %v421
        %423 = vmatmul.bf16.gmra.mxu0 %v315
        %v424 = vpop.f32.mrf.mxu0
        %v425 = vadd.f32 0.0, %v424
        %v426 = vpop.f32.mrf.mxu0
        %v427 = vadd.f32 0.0, %v426
        %428 = vdwg.mxu0
        %v429 = vadd.f32 %v292, %v390
        %v430 = vadd.f32 %v293, %v392
        %v431 = vadd.f32 %v294, %v395
        %v432 = vadd.f32 %v295, %v397
        %v433 = vadd.f32 %v296, %v400
        %v434 = vadd.f32 %v297, %v402
        %v435 = vadd.f32 %v298, %v405
        %v436 = vadd.f32 %v299, %v407
        %v437 = vadd.f32 %v300, %v410
        %v438 = vadd.f32 %v301, %v412
        %v439 = vadd.f32 %v302, %v415
        %v440 = vadd.f32 %v303, %v417
        %v441 = vadd.f32 %v304, %v420
        %v442 = vadd.f32 %v305, %v422
        %v443 = vadd.f32 %v306, %v425
        %v444 = vadd.f32 %v307, %v427
        %445 = vst [vmem:[%s248] sm:$0xff] %v429
        %446 = vst [vmem:[%s248 + $0x8] sm:$0xff] %v430
        %447 = vst [vmem:[%s248 + $0x10] sm:$0xff] %v431
        %448 = vst [vmem:[%s248 + $0x18] sm:$0xff] %v432
        %449 = vst [vmem:[%s248 + $0x20] sm:$0xff] %v433
        %450 = vst [vmem:[%s248 + $0x28] sm:$0xff] %v434
        %451 = vst [vmem:[%s248 + $0x30] sm:$0xff] %v435
        %452 = vst [vmem:[%s248 + $0x38] sm:$0xff] %v436
        %453 = vst [vmem:[%s248 + $0x40] sm:$0xff] %v437
        %454 = vst [vmem:[%s248 + $0x48] sm:$0xff] %v438
        %455 = vst [vmem:[%s248 + $0x50] sm:$0xff] %v439
        %456 = vst [vmem:[%s248 + $0x58] sm:$0xff] %v440
        %457 = vst [vmem:[%s248 + $0x60] sm:$0xff] %v441
        %458 = vst [vmem:[%s248 + $0x68] sm:$0xff] %v442
        %459 = vst [vmem:[%s248 + $0x70] sm:$0xff] %v443
        %460 = vst [vmem:[%s248 + $0x78] sm:$0xff] %v444
        %s461 = sand.u32 %s118, 1
        %s462 = scalar_lea.sflag [#allocation4], %s461
        %s463 = sand.u32 %s118, 1
        %s464 = smul.addr %s463, 128
        %s465 = scalar_lea.vmem [#allocation7], %s464
        // Predicated region
        $region45: #{tpu_custom_call.1} parent=31 // pred_check
          %p466 = pneg %p128
        $region46: #{tpu_custom_call.1} parent=31 // pred_check_branch
          %468 = sbr.rel (%p466) target = $region48
        $region47: #{tpu_custom_call.1} parent=31 // pred_region
          %s469 = smul.u32 16, %s27
          %471 = vsyncadd %s462, 0
          %s472 = smul.addr %s469, 8
          %s473 = scalar_lea.hbm %s3, %s472
          %s474 = sshll.u32 %s465, 4
          %s475 = int_to_ptr.vmem [resolvable:$true] %s474
          %s476 = sshll.u32 %s473, 4
          %s477 = int_to_ptr.hbm [resolvable:$true] %s476
          %482 = dma.vmem_to_hbm [thread:$0]  %s475, 2048, %s477, %s462, 128, 128, 8
        $region48: #{tpu_custom_call.1} parent=31 // pred_fallthru
          _
      $region32: #{tpu_custom_call.1} parent=5 // pred_fallthru
        _
      %p483 = scmp.le.s32.totalorder 2, %s18
      // Predicated region
      $region49: #{tpu_custom_call.1} parent=5 // pred_check
        %p484 = pneg %p483
      $region50: #{tpu_custom_call.1} parent=5 // pred_check_branch
        %486 = sbr.rel (%p484) target = $region52
      $region51: #{tpu_custom_call.1} parent=5 // pred_region
        %s487 = ssub.s32 %s18, 2
        // Predicated region
        $region53: #{tpu_custom_call.1} parent=51 // pred_check
          %p488 = pneg %p134
        $region54: #{tpu_custom_call.1} parent=51 // pred_check_branch
          %490 = sbr.rel (%p488) target = $region56
        $region55: #{tpu_custom_call.1} parent=51 // pred_region
          %s491 = sand.u32 %s119, 1
          %s492 = scalar_lea.sflag [#allocation4], %s491
          %s493 = sand.u32 %s119, 1
          %s494 = smul.addr %s493, 128
          %s495 = scalar_lea.vmem [#allocation7], %s494
          %497 = dma.done %s492, 2048
        $region56: #{tpu_custom_call.1} parent=51 // pred_fallthru
          _
      $region52: #{tpu_custom_call.1} parent=5 // pred_fallthru
        _
    $region6: #{tpu_custom_call.1} parent=1 // loop_footer
      %s22 = sadd.s32 1, %s18
    $region7: #{tpu_custom_call.1} parent=1 // loop_footer_branch
      %17 = sbr.rel target = $region3
    $region8: #{tpu_custom_call.1} parent=1 // loop_exit
      _
    %498 = vsyncpa [#allocation3], 1
    %s499 = scalar_lea.sflag [#allocation3], 1
    %500 = vsyncpa %s499, 1
    %501 = vsyncpa [#allocation6], 1
    %s502 = scalar_lea.sflag [#allocation6], 1
    %503 = vsyncpa %s502, 1
    %504 = vsyncpa [#allocation4], 1
    %s505 = scalar_lea.sflag [#allocation4], 1
    %506 = vsyncpa %s505, 1

</llo_original>
